<compile_context>
chip_gen: v7x
topology: tpu7x:2x2x1
jax: 0.10.0
libtpu: 0.0.40
codegen_flags: <defaults>
</compile_context>

<pallas_src>
import jax
import jax.numpy as jnp
import numpy as np
from jax.experimental import pallas as pl
from jax.experimental.pallas import tpu as pltpu

K = 5       # conv kernel size
PAD = 2     # "same" padding for k=5, dilation=1
EPS = 1e-5  # PyTorch BatchNorm1d default


# ---------------------------------------------------------------------------
# host-side helpers
# ---------------------------------------------------------------------------
def _vmem_limit_bytes():
    """Generation-aware VMEM budget: ~3/4 of physical (96 MiB v5e/v6e, 48 MiB v7x)."""
    cap = 64 * 1024 * 1024
    try:
        cap = int(getattr(pltpu.get_tpu_info(), "vmem_capacity_bytes", cap))
    except Exception:
        pass
    return min((cap * 3) // 4, 112 * 1024 * 1024)


def _compiler_params(semantics):
    return pltpu.CompilerParams(dimension_semantics=semantics,
                                vmem_limit_bytes=_vmem_limit_bytes())


def _choose_nb(n, length, target_lanes=512):
    """Batch items packed per tile: NB | N and NB*L a multiple of 128 (lane-dense),
    aiming for ~512 lanes per grid step; fall back to the whole batch in one tile."""
    divs = [d for d in range(1, n + 1) if n % d == 0]
    cands = [d for d in divs if (d * length) % 128 == 0]
    if not cands:
        return n                      # block equals full array dim -> always legal
    reach = [d for d in cands if d * length >= target_lanes]
    return min(reach) if reach else max(cands)


def _fold_bn(sums, sumsqs, count, gamma, beta):
    """Fold training-mode BN (biased variance over N*L) into per-channel scale/bias."""
    mean = sums / count
    var = jnp.maximum(sumsqs / count - mean * mean, 0.0)   # clamp E[x^2]-E[x]^2 cancellation
    scale = gamma * jax.lax.rsqrt(var + EPS)
    return scale, beta - mean * scale


# ---------------------------------------------------------------------------
# in-kernel helpers
# ---------------------------------------------------------------------------
def _shift_l(x, d):
    """y[:, c] = x[:, c + d], zero outside the tile.  x: (C, TL)."""
    c, tl = x.shape
    if d == 0:
        return x
    z = jnp.zeros((c, abs(d)), x.dtype)
    if d > 0:
        return jnp.concatenate([x[:, d:], z], axis=1)
    return jnp.concatenate([z, x[:, :tl + d]], axis=1)


def _masked_taps(x, item_len):
    """K shifted taps of x (C, TL), TL = NB*item_len, columns packed item-major
    (col = b*item_len + l).  Tap k holds x[:, col + (k - PAD)] with zero padding that
    never leaks across item boundaries (lane mask on col % item_len)."""
    _, tl = x.shape
    need_mask = tl != item_len
    if need_mask:
        pos = jax.lax.broadcasted_iota(jnp.int32, (1, tl), 1) % item_len
    taps = []
    for k in range(K):
        d = k - PAD
        sh = _shift_l(x, d)
        if need_mask and d != 0:
            valid = jnp.logical_and(pos + d >= 0, pos + d < item_len)
            sh = jnp.where(valid, sh, jnp.zeros_like(sh))
        taps.append(sh)
    return taps


def _conv_same(x, w_im, item_len):
    """k=5 'same' conv as matmul: x (Cin, TL), w_im (R, K*Cin) -> (R, TL) f32.
    For large Cin, K accumulating dots on the taps (full-depth contraction per tap)
    avoid materializing the (K*Cin, TL) im2col slab (v7x 64 MiB VMEM budget)."""
    cin, tl = x.shape
    taps = _masked_taps(x, item_len)
    if cin >= 128:
        acc = jnp.zeros((w_im.shape[0], tl), jnp.float32)
        for k in range(K):
            wk = w_im[:, k * cin:(k + 1) * cin]
            acc = acc + jnp.dot(wk, taps[k], preferred_element_type=jnp.float32)
        return acc
    xim = jnp.concatenate(taps, axis=0)                          # (K*Cin, TL)
    return jnp.dot(w_im, xim, preferred_element_type=jnp.float32)


def _sum_sumsq(y):
    """Per-channel (row) sum and sum-of-squares over the lane axis -> (R, 2)."""
    s1 = jnp.sum(y, axis=1, keepdims=True)
    s2 = jnp.sum(y * y, axis=1, keepdims=True)
    return jnp.concatenate([s1, s2], axis=1)


# ---------------------------------------------------------------------------
# wrapper: three pipelined pallas_calls + tiny BN-folding glue
# ---------------------------------------------------------------------------
def residual_block(x_ncl, params):
    """x_ncl: (N, C_in, L) exactly like the PyTorch module (stride=1).  Returns (N, C_out, L)."""
    w1, w2 = params["w1"], params["w2"]
    g1, b1, g2, b2 = params["g1"], params["b1"], params["g2"], params["b2"]
    n, c_in, length = x_ncl.shape
    c_out = w1.shape[0]
    projection = "ws" in params        # conv+BN shortcut iff in_channels != out_channels
    dtype = x_ncl.dtype

    nb = _choose_nb(n, length)         # batch items per tile (lane packing)
    tile_l = nb * length               # lane width per grid step
    g_steps = n // nb
    nc = 2 if (g_steps >= 2 and g_steps % 2 == 0) else 1   # megacore split of the grid
    gc = g_steps // nc
    nt = n * length

    # Lane-dense working layout (C, N*L): one transpose in, one out (layout plumbing).
    x2 = jnp.transpose(x_ncl, (1, 0, 2)).reshape(c_in, nt)

    # im2col weight layouts: W[co, k*Cin + ci] = w[co, ci, k]
    w1_im = jnp.transpose(w1, (0, 2, 1)).reshape(c_out, K * c_in)
    w2_im = jnp.transpose(w2, (0, 2, 1)).reshape(c_out, K * c_out)
    if projection:
        ws2d = params["ws"].reshape(c_out, c_in)
        wsc_rows = jnp.zeros((c_out, K * c_in), w1.dtype)
        wsc_rows = wsc_rows.at[:, PAD * c_in:(PAD + 1) * c_in].set(ws2d)  # 1x1 = center tap
        w_stats = jnp.concatenate([w1_im, wsc_rows], axis=0)              # (2*Cout, K*Cin)
    else:
        w_stats = w1_im                                                    # (Cout, K*Cin)
    r = w_stats.shape[0]

    cp_acc = _compiler_params(("parallel", "arbitrary"))
    cp_par = _compiler_params(("parallel",))

    xcol = pl.BlockSpec((c_in, tile_l), lambda c, s: (0, c * gc + s))
    ycol = pl.BlockSpec((c_out, tile_l), lambda c, s: (0, c * gc + s))

    def _full2(a):
        return pl.BlockSpec(a.shape, lambda c, s: (0, 0))

    # ---- pass 1: conv1 (+ fused 1x1-shortcut rows) -> per-channel (sum, sumsq) --------
    def k1(x_ref, wf_ref, st_ref):
        @pl.when(pl.program_id(1) == 0)
        def _():
            st_ref[...] = jnp.zeros_like(st_ref)
        y = _conv_same(x_ref[...], wf_ref[...], length)           # (R, TL) f32
        st_ref[...] = st_ref[...] + _sum_sumsq(y)[None]

    stats1 = pl.pallas_call(
        k1,
        grid=(nc, gc),
        in_specs=[xcol, _full2(w_stats)],
        out_specs=pl.BlockSpec((1, r, 2), lambda c, s: (c, 0, 0)),
        out_shape=jax.ShapeDtypeStruct((nc, r, 2), jnp.float32),
        compiler_params=cp_acc,
    )(x2, w_stats)

    cnt = jnp.float32(n * length)
    st1 = jnp.sum(stats1, axis=0)                                  # tiny nc-way sum
    scale1, bias1 = _fold_bn(st1[:c_out, 0], st1[:c_out, 1], cnt, g1, b1)
    sb1 = jnp.stack([scale1, bias1], axis=1).astype(jnp.float32)   # (Cout, 2)
    if projection:
        scale_s, bias_s = _fold_bn(st1[c_out:, 0], st1[c_out:, 1], cnt,
                                   params["gs"], params["bs"])

    # ---- pass 2: conv1 -> folded BN1 -> ReLU -> conv2; emit y2 (f32) + its stats ------
    # conv1 is recomputed rather than spilling y1 to HBM (right call while HBM-bound at
    # small C; revisit if MXU-bound at large K*Cin).
    def k2(x_ref, w1_ref, w2_ref, sb1_ref, y2_ref, st_ref):
        @pl.when(pl.program_id(1) == 0)
        def _():
            st_ref[...] = jnp.zeros_like(st_ref)
        sb = sb1_ref[...]
        y1 = _conv_same(x_ref[...], w1_ref[...], length)           # (Cout, TL) f32
        h = jnp.maximum(y1 * sb[:, 0:1] + sb[:, 1:2], 0.0)         # folded BN1 + ReLU
        y2 = _conv_same(h, w2_ref[...], length)                    # (Cout, TL) f32
        y2_ref[...] = y2
        st_ref[...] = st_ref[...] + _sum_sumsq(y2)[None]

    y2, stats2 = pl.pallas_call(
        k2,
        grid=(nc, gc),
        in_specs=[xcol, _full2(w1_im), _full2(w2_im), _full2(sb1)],
        out_specs=[ycol, pl.BlockSpec((1, c_out, 2), lambda c, s: (c, 0, 0))],
        out_shape=(jax.ShapeDtypeStruct((c_out, nt), jnp.float32),
                   jax.ShapeDtypeStruct((nc, c_out, 2), jnp.float32)),
        compiler_params=cp_acc,
    )(x2, w1_im, w2_im, sb1)

    st2 = jnp.sum(stats2, axis=0)
    scale2, bias2 = _fold_bn(st2[:, 0], st2[:, 1], cnt, g2, b2)

    # ---- pass 3: BN2 + shortcut + ReLU, lane-dense output -----------------------------
    x1d = pl.BlockSpec((c_in, tile_l), lambda s: (0, s))
    y1d = pl.BlockSpec((c_out, tile_l), lambda s: (0, s))

    if projection:
        # Shortcut recomputed from x (Cin <= Cout => fewer HBM bytes than spilling it
        # from K2; flip to spilling extra rows from K2 if Cin > Cout).
        sb23 = jnp.stack([scale2, bias2, scale_s, bias_s], axis=1).astype(jnp.float32)

        def k3(x_ref, y2_ref, wsc_ref, sb_ref, o_ref):
            sb = sb_ref[...]
            sc = jnp.dot(wsc_ref[...], x_ref[...], preferred_element_type=jnp.float32)
            o = (y2_ref[...] * sb[:, 0:1] + sb[:, 1:2]
                 + sc * sb[:, 2:3] + sb[:, 3:4])
            o_ref[...] = jnp.maximum(o, 0.0).astype(o_ref.dtype)

        out2 = pl.pallas_call(
            k3,
            grid=(g_steps,),
            in_specs=[x1d, y1d,
                      pl.BlockSpec(ws2d.shape, lambda s: (0, 0)),
                      pl.BlockSpec(sb23.shape, lambda s: (0, 0))],
            out_specs=y1d,
            out_shape=jax.ShapeDtypeStruct((c_out, nt), dtype),
            compiler_params=cp_par,
        )(x2, y2, ws2d, sb23)
    else:
        sb2 = jnp.stack([scale2, bias2], axis=1).astype(jnp.float32)

        def k3(x_ref, y2_ref, sb_ref, o_ref):
            sb = sb_ref[...]
            o = y2_ref[...] * sb[:, 0:1] + sb[:, 1:2] + x_ref[...].astype(jnp.float32)
            o_ref[...] = jnp.maximum(o, 0.0).astype(o_ref.dtype)

        out2 = pl.pallas_call(
            k3,
            grid=(g_steps,),
            in_specs=[x1d, y1d, pl.BlockSpec(sb2.shape, lambda s: (0, 0))],
            out_specs=y1d,
            out_shape=jax.ShapeDtypeStruct((c_out, nt), dtype),
            compiler_params=cp_par,
        )(x2, y2, sb2)

    return jnp.transpose(out2.reshape(c_out, n, length), (1, 0, 2))   # back to (N, Cout, L)


# ---------------------------------------------------------------------------
# pure-JAX reference (mirrors the PyTorch module, training-mode BN) + test
# ---------------------------------------------------------------------------
def reference_forward(x, params):
    def conv(z, w, p):
        return jax.lax.conv_general_dilated(
            z, w, window_strides=(1,), padding=((p, p),),
            dimension_numbers=("NCH", "OIH", "NCH"))

    def bn(z, g, b):
        mean = jnp.mean(z, axis=(0, 2), keepdims=True)
        var = jnp.mean((z - mean) ** 2, axis=(0, 2), keepdims=True)
        return ((z - mean) * jax.lax.rsqrt(var + EPS) * g.reshape(1, -1, 1)
                + b.reshape(1, -1, 1))

    h = jax.nn.relu(bn(conv(x, params["w1"], PAD), params["g1"], params["b1"]))
    h2 = bn(conv(h, params["w2"], PAD), params["g2"], params["b2"])
    if "ws" in params:
        sc = bn(conv(x, params["ws"], 0), params["gs"], params["bs"])
    else:
        sc = x
    return jax.nn.relu(h2 + sc)


def init_params(key, c_in, c_out, projection=True):
    ks = jax.random.split(key, 9)
    p = {
        "w1": 0.1 * jax.random.normal(ks[0], (c_out, c_in, K), jnp.float32),   # (O, I, K)
        "w2": 0.1 * jax.random.normal(ks[1], (c_out, c_out, K), jnp.float32),
        "g1": 1.0 + 0.05 * jax.random.normal(ks[2], (c_out,), jnp.float32),
        "b1": 0.05 * jax.random.normal(ks[3], (c_out,), jnp.float32),
        "g2": 1.0 + 0.05 * jax.random.normal(ks[4], (c_out,), jnp.float32),
        "b2": 0.05 * jax.random.normal(ks[5], (c_out,), jnp.float32),
    }
    if projection:
        p["ws"] = 0.1 * jax.random.normal(ks[6], (c_out, c_in, 1), jnp.float32)  # 1x1 conv
        p["gs"] = 1.0 + 0.05 * jax.random.normal(ks[7], (c_out,), jnp.float32)
        p["bs"] = 0.05 * jax.random.normal(ks[8], (c_out,), jnp.float32)
    return p


if __name__ == "__main__":
    key = jax.random.PRNGKey(0)
    kx1, kp1, kx2, kp2 = jax.random.split(key, 4)

    # Case 1: projection shortcut (in_channels != out_channels).  N*L = 128, so the whole
    # batch packs into a single lane-dense 128-column tile.
    N, C_IN, C_OUT, L = 8, 4, 8, 16
    x = jax.random.normal(kx1, (N, C_IN, L), jnp.float32)          # PyTorch NCL layout
    params = init_params(kp1, C_IN, C_OUT, projection=True)
    out = jax.block_until_ready(residual_block(x, params))
    ref = jax.block_until_ready(reference_forward(x, params))
    assert out.shape == (N, C_OUT, L)
    np.testing.assert_allclose(np.asarray(out), np.asarray(ref), rtol=2e-3, atol=2e-3)

    # Case 2: identity shortcut (in_channels == out_channels, stride=1).
    xi = jax.random.normal(kx2, (N, C_OUT, L), jnp.float32)
    params_i = init_params(kp2, C_OUT, C_OUT, projection=False)
    out_i = jax.block_until_ready(residual_block(xi, params_i))
    ref_i = jax.block_until_ready(reference_forward(xi, params_i))
    np.testing.assert_allclose(np.asarray(out_i), np.asarray(ref_i), rtol=2e-3, atol=2e-3)

    print("KERNEL_OK")
</pallas_src>

<mosaic_0001>
module attributes {stable_mosaic.version = 11 : i64} {
  func.func @k1(%arg0: i32, %arg1: i32, %arg2: memref<4x128xf32, #tpu.memory_space<vmem>>, %arg3: memref<16x20xf32, #tpu.memory_space<vmem>>, %arg4: memref<1x16x2xf32, #tpu.memory_space<vmem>>) attributes {dimension_semantics = [#tpu.dimension_semantics<parallel>, #tpu.dimension_semantics<arbitrary>], iteration_bounds = array<i64: 1, 1>, scalar_prefetch = 0 : i64, scratch_operands = 0 : i64, tpu.core_type = #tpu.core_type<tc>, window_params = [{transform_indices = @transform_0, window_bounds = array<i64: 4, 128>}, {pipeline_mode = #tpu.pipeline_mode<synchronous>, transform_indices = @transform_1, window_bounds = array<i64: 16, 20>}, {transform_indices = @transform_2, window_bounds = array<i64: 1, 16, 2>}]} {
    %c0_i32 = arith.constant 0 : i32
    %0 = arith.cmpi eq, %arg1, %c0_i32 : i32
    %1 = arith.extui %0 : i1 to i32
    %c0_i32_0 = arith.constant 0 : i32
    %2 = arith.cmpi ne, %1, %c0_i32_0 : i32
    scf.if %2 {
      %cst_37 = arith.constant 0.000000e+00 : f32
      %98 = vector.broadcast %cst_37 : f32 to vector<1x16x2xf32>
      %c0_38 = arith.constant 0 : index
      %c0_39 = arith.constant 0 : index
      %c0_40 = arith.constant 0 : index
      %99 = vector.load %arg4[%c0_38, %c0_39, %c0_40] : memref<1x16x2xf32, #tpu.memory_space<vmem>>, vector<1x16x2xf32>
      tpu.vector_store %arg4[%c0_38, %c0_39, %c0_40], %98 {strides = array<i32>} : memref<1x16x2xf32, #tpu.memory_space<vmem>>, vector<1x16x2xf32>,
    } else {
    }
    %c0 = arith.constant 0 : index
    %c0_1 = arith.constant 0 : index
    %3 = vector.load %arg2[%c0, %c0_1] : memref<4x128xf32, #tpu.memory_space<vmem>>, vector<4x128xf32>
    %c0_2 = arith.constant 0 : index
    %c0_3 = arith.constant 0 : index
    %4 = vector.load %arg3[%c0_2, %c0_3] : memref<16x20xf32, #tpu.memory_space<vmem>>, vector<16x20xf32>
    %5 = tpu.iota {dimensions = array<i32: 1>} : vector<1x128xi32>
    %c16_i32 = arith.constant 16 : i32
    %c0_i32_4 = arith.constant 0 : i32
    %6 = arith.cmpi eq, %c16_i32, %c0_i32_4 : i32
    %c1_i32 = arith.constant 1 : i32
    %7 = arith.select %6, %c1_i32, %c16_i32 : i32
    %8 = vector.broadcast %7 : i32 to vector<1x128xi32>
    %9 = arith.remsi %5, %8 : vector<1x128xi32>
    %c0_i32_5 = arith.constant 0 : i32
    %10 = vector.broadcast %c0_i32_5 : i32 to vector<1x128xi32>
    %11 = arith.cmpi ne, %9, %10 : vector<1x128xi32>
    %c0_i32_6 = arith.constant 0 : i32
    %12 = vector.broadcast %c0_i32_6 : i32 to vector<1x128xi32>
    %13 = arith.cmpi slt, %9, %12 : vector<1x128xi32>
    %c0_i32_7 = arith.constant 0 : i32
    %14 = arith.cmpi slt, %7, %c0_i32_7 : i32
    %15 = vector.broadcast %14 : i1 to vector<1x128xi1>
    %16 = vector.broadcast %15 : vector<1x128xi1> to vector<1x128xi1>
    %17 = arith.xori %13, %16 : vector<1x128xi1>
    %18 = arith.andi %17, %11 : vector<1x128xi1>
    %19 = vector.broadcast %7 : i32 to vector<1x128xi32>
    %20 = arith.addi %9, %19 : vector<1x128xi32>
    %21 = arith.select %18, %20, %9 : vector<1x128xi1>, vector<1x128xi32>
    %cst = arith.constant 0.000000e+00 : f32
    %22 = vector.broadcast %cst : f32 to vector<4x2xf32>
    %23 = vector.extract_strided_slice %3 {offsets = [0, 0], sizes = [4, 126], strides = [1, 1]} : vector<4x128xf32> to vector<4x126xf32>
    %24 = tpu.concatenate %22, %23 in 1 : vector<4x2xf32>, vector<4x126xf32> -> vector<4x128xf32>
    %c-2_i32 = arith.constant -2 : i32
    %25 = vector.broadcast %c-2_i32 : i32 to vector<1x128xi32>
    %26 = arith.addi %21, %25 : vector<1x128xi32>
    %c0_i32_8 = arith.constant 0 : i32
    %27 = vector.broadcast %c0_i32_8 : i32 to vector<1x128xi32>
    %28 = arith.cmpi sge, %26, %27 : vector<1x128xi32>
    %c-2_i32_9 = arith.constant -2 : i32
    %29 = vector.broadcast %c-2_i32_9 : i32 to vector<1x128xi32>
    %30 = arith.addi %21, %29 : vector<1x128xi32>
    %c16_i32_10 = arith.constant 16 : i32
    %31 = vector.broadcast %c16_i32_10 : i32 to vector<1x128xi32>
    %32 = arith.cmpi slt, %30, %31 : vector<1x128xi32>
    %33 = arith.andi %28, %32 : vector<1x128xi1>
    %cst_11 = arith.constant 0.000000e+00 : f32
    %34 = vector.broadcast %cst_11 : f32 to vector<4x128xf32>
    %35 = vector.shape_cast %33 : vector<1x128xi1> to vector<1x128xi1>
    %36 = vector.broadcast %35 : vector<1x128xi1> to vector<4x128xi1>
    %37 = arith.select %36, %24, %34 : vector<4x128xi1>, vector<4x128xf32>
    %cst_12 = arith.constant 0.000000e+00 : f32
    %38 = vector.broadcast %cst_12 : f32 to vector<4x1xf32>
    %39 = vector.extract_strided_slice %3 {offsets = [0, 0], sizes = [4, 127], strides = [1, 1]} : vector<4x128xf32> to vector<4x127xf32>
    %40 = tpu.concatenate %38, %39 in 1 : vector<4x1xf32>, vector<4x127xf32> -> vector<4x128xf32>
    %c-1_i32 = arith.constant -1 : i32
    %41 = vector.broadcast %c-1_i32 : i32 to vector<1x128xi32>
    %42 = arith.addi %21, %41 : vector<1x128xi32>
    %c0_i32_13 = arith.constant 0 : i32
    %43 = vector.broadcast %c0_i32_13 : i32 to vector<1x128xi32>
    %44 = arith.cmpi sge, %42, %43 : vector<1x128xi32>
    %c-1_i32_14 = arith.constant -1 : i32
    %45 = vector.broadcast %c-1_i32_14 : i32 to vector<1x128xi32>
    %46 = arith.addi %21, %45 : vector<1x128xi32>
    %c16_i32_15 = arith.constant 16 : i32
    %47 = vector.broadcast %c16_i32_15 : i32 to vector<1x128xi32>
    %48 = arith.cmpi slt, %46, %47 : vector<1x128xi32>
    %49 = arith.andi %44, %48 : vector<1x128xi1>
    %cst_16 = arith.constant 0.000000e+00 : f32
    %50 = vector.broadcast %cst_16 : f32 to vector<4x128xf32>
    %51 = vector.shape_cast %49 : vector<1x128xi1> to vector<1x128xi1>
    %52 = vector.broadcast %51 : vector<1x128xi1> to vector<4x128xi1>
    %53 = arith.select %52, %40, %50 : vector<4x128xi1>, vector<4x128xf32>
    %cst_17 = arith.constant 0.000000e+00 : f32
    %54 = vector.broadcast %cst_17 : f32 to vector<4x1xf32>
    %55 = vector.extract_strided_slice %3 {offsets = [0, 1], sizes = [4, 127], strides = [1, 1]} : vector<4x128xf32> to vector<4x127xf32>
    %56 = tpu.concatenate %55, %54 in 1 : vector<4x127xf32>, vector<4x1xf32> -> vector<4x128xf32>
    %c1_i32_18 = arith.constant 1 : i32
    %57 = vector.broadcast %c1_i32_18 : i32 to vector<1x128xi32>
    %58 = arith.addi %21, %57 : vector<1x128xi32>
    %c0_i32_19 = arith.constant 0 : i32
    %59 = vector.broadcast %c0_i32_19 : i32 to vector<1x128xi32>
    %60 = arith.cmpi sge, %58, %59 : vector<1x128xi32>
    %c1_i32_20 = arith.constant 1 : i32
    %61 = vector.broadcast %c1_i32_20 : i32 to vector<1x128xi32>
    %62 = arith.addi %21, %61 : vector<1x128xi32>
    %c16_i32_21 = arith.constant 16 : i32
    %63 = vector.broadcast %c16_i32_21 : i32 to vector<1x128xi32>
    %64 = arith.cmpi slt, %62, %63 : vector<1x128xi32>
    %65 = arith.andi %60, %64 : vector<1x128xi1>
    %cst_22 = arith.constant 0.000000e+00 : f32
    %66 = vector.broadcast %cst_22 : f32 to vector<4x128xf32>
    %67 = vector.shape_cast %65 : vector<1x128xi1> to vector<1x128xi1>
    %68 = vector.broadcast %67 : vector<1x128xi1> to vector<4x128xi1>
    %69 = arith.select %68, %56, %66 : vector<4x128xi1>, vector<4x128xf32>
    %cst_23 = arith.constant 0.000000e+00 : f32
    %70 = vector.broadcast %cst_23 : f32 to vector<4x2xf32>
    %71 = vector.extract_strided_slice %3 {offsets = [0, 2], sizes = [4, 126], strides = [1, 1]} : vector<4x128xf32> to vector<4x126xf32>
    %72 = tpu.concatenate %71, %70 in 1 : vector<4x126xf32>, vector<4x2xf32> -> vector<4x128xf32>
    %c2_i32 = arith.constant 2 : i32
    %73 = vector.broadcast %c2_i32 : i32 to vector<1x128xi32>
    %74 = arith.addi %21, %73 : vector<1x128xi32>
    %c0_i32_24 = arith.constant 0 : i32
    %75 = vector.broadcast %c0_i32_24 : i32 to vector<1x128xi32>
    %76 = arith.cmpi sge, %74, %75 : vector<1x128xi32>
    %c2_i32_25 = arith.constant 2 : i32
    %77 = vector.broadcast %c2_i32_25 : i32 to vector<1x128xi32>
    %78 = arith.addi %21, %77 : vector<1x128xi32>
    %c16_i32_26 = arith.constant 16 : i32
    %79 = vector.broadcast %c16_i32_26 : i32 to vector<1x128xi32>
    %80 = arith.cmpi slt, %78, %79 : vector<1x128xi32>
    %81 = arith.andi %76, %80 : vector<1x128xi1>
    %cst_27 = arith.constant 0.000000e+00 : f32
    %82 = vector.broadcast %cst_27 : f32 to vector<4x128xf32>
    %83 = vector.shape_cast %81 : vector<1x128xi1> to vector<1x128xi1>
    %84 = vector.broadcast %83 : vector<1x128xi1> to vector<4x128xi1>
    %85 = arith.select %84, %72, %82 : vector<4x128xi1>, vector<4x128xf32>
    %86 = tpu.concatenate %37, %53, %3, %69, %85 in 0 : vector<4x128xf32>, vector<4x128xf32>, vector<4x128xf32>, vector<4x128xf32>, vector<4x128xf32> -> vector<20x128xf32>
    %cst_28 = arith.constant dense<0.000000e+00> : vector<16x128xf32>
    %87 = tpu.matmul %4, %86, %cst_28 {dimension_numbers = #tpu.dot_dimension_numbers<[1], [0], [0], [1], [0, 0, 1, 1], [], []>} : vector<16x20xf32>, vector<20x128xf32>, vector<16x128xf32> -> vector<16x128xf32>
    %c0_29 = arith.constant 0 : index
    %c0_30 = arith.constant 0 : index
    %c0_31 = arith.constant 0 : index
    %88 = vector.load %arg4[%c0_29, %c0_30, %c0_31] : memref<1x16x2xf32, #tpu.memory_space<vmem>>, vector<1x16x2xf32>
    %cst_32 = arith.constant dense<0.000000e+00> : vector<16xf32>
    %89 = vector.multi_reduction <add>, %87, %cst_32 [1] : vector<16x128xf32> to vector<16xf32>
    %90 = vector.shape_cast %89 : vector<16xf32> to vector<16x1xf32>
    %91 = arith.mulf %87, %87 : vector<16x128xf32>
    %cst_33 = arith.constant dense<0.000000e+00> : vector<16xf32>
    %92 = vector.multi_reduction <add>, %91, %cst_33 [1] : vector<16x128xf32> to vector<16xf32>
    %93 = vector.shape_cast %92 : vector<16xf32> to vector<16x1xf32>
    %94 = tpu.concatenate %90, %93 in 1 : vector<16x1xf32>, vector<16x1xf32> -> vector<16x2xf32>
    %95 = vector.shape_cast %94 : vector<16x2xf32> to vector<1x16x2xf32>
    %96 = arith.addf %88, %95 : vector<1x16x2xf32>
    %c0_34 = arith.constant 0 : index
    %c0_35 = arith.constant 0 : index
    %c0_36 = arith.constant 0 : index
    %97 = vector.load %arg4[%c0_34, %c0_35, %c0_36] : memref<1x16x2xf32, #tpu.memory_space<vmem>>, vector<1x16x2xf32>
    tpu.vector_store %arg4[%c0_34, %c0_35, %c0_36], %96 {strides = array<i32>} : memref<1x16x2xf32, #tpu.memory_space<vmem>>, vector<1x16x2xf32>,
    return
  }
  func.func @transform_0(%arg0: i32, %arg1: i32) -> (i32, i32) {
    %c1_i32 = arith.constant 1 : i32
    %0 = arith.muli %arg0, %c1_i32 : i32
    %1 = arith.addi %0, %arg1 : i32
    %c0_i32 = arith.constant 0 : i32
    %c0_i32_0 = arith.constant 0 : i32
    return %c0_i32, %1 : i32, i32
  }
  func.func @transform_1(%arg0: i32, %arg1: i32) -> (i32, i32) {
    %c0_i32 = arith.constant 0 : i32
    %c0_i32_0 = arith.constant 0 : i32
    %c0_i32_1 = arith.constant 0 : i32
    return %c0_i32, %c0_i32_0 : i32, i32
  }
  func.func @transform_2(%arg0: i32, %arg1: i32) -> (i32, i32, i32) {
    %c0_i32 = arith.constant 0 : i32
    %c0_i32_0 = arith.constant 0 : i32
    %c0_i32_1 = arith.constant 0 : i32
    return %arg0, %c0_i32, %c0_i32_0 : i32, i32, i32
  }
}

</mosaic_0001>

<llo_original>
// kernel: tpu_custom_call.1
$region0: #{tpu_custom_call.1}
  #allocation0 [shape = 'u32[]', space=smem, size = 0x4, offset = 0x4, fixed_abs, tag = 'smem constant byte address 0x4 - core index']
  #allocation1 [shape = 'u32[144,128]{1,0:T(1,128)}', space=vmem, size = 0x12000, scoped, tag = 'internal scratch']
  %s0 = inlined_call_operand.hbm [shape: f32[4,128], index: 0, kind: input, shape index: {}]
  %s1 = inlined_call_operand.hbm [shape: f32[16,20], index: 1, kind: input, shape index: {}]
  %s2 = inlined_call_operand.vmem [shape: f32[1,16,2], index: 2, kind: output, shape index: {}]
  %s3 = sld [smem:[#allocation0]]
  $region30: #{tpu_custom_call.1} parent=0
    _
  %s5 = ssub.s32 1, %s3
  %s6 = scalar_select 0, %s5, %s3
  $region1: #{tpu_custom_call.1} parent=0
    #allocation2 [shape = 'u8[2048]{0}', space=vmem, size = 0x800, scoped, tag = 'input window, operand 0, single buffered']
    #allocation3 [shape = 's32[1]{0}', space=sflag, size = 0x4, scoped, tag = 'scoped memory for tpu_custom_call.1']
    #allocation4 [shape = 'u8[8192]{0}', space=vmem, size = 0x2000, scoped, tag = 'input window, operand 1, single buffered']
    #allocation5 [shape = 's32[1]{0}', space=sflag, size = 0x4, scoped, tag = 'scoped memory for tpu_custom_call.1']
    %7 = vsyncpa [#allocation3], 0
    %8 = vsyncpa [#allocation5], 0
    // Predicated region
    $region2: #{tpu_custom_call.1} parent=1 // pred_check
      _
    $region3: #{tpu_custom_call.1} parent=1 // pred_check_branch
      %10 = sbr.rel (0) target = $region5
    $region4: #{tpu_custom_call.1} parent=1 // pred_region
      %s11 = sadd.s32 0, 0
      %s13 = ssub.s32 64, 64
      %14 = vsyncadd [#allocation3], %s13
      %s15 = smul.addr %s11, 64
      %s16 = scalar_lea.hbm %s0, %s15
      %s18 = sshll.u32 [#allocation2], 4
      %s19 = int_to_ptr.vmem [resolvable:$true] %s18
      %21 = dma.hbm_to_vmem [thread:$0]  %s16, 64, %s19, [#allocation3]
    $region5: #{tpu_custom_call.1} parent=1 // pred_fallthru
      _
    // Predicated region
    $region6: #{tpu_custom_call.1} parent=1 // pred_check
      _
    $region7: #{tpu_custom_call.1} parent=1 // pred_check_branch
      %23 = sbr.rel (0) target = $region9
    $region8: #{tpu_custom_call.1} parent=1 // pred_region
      %s25 = ssub.s32 256, 256
      %26 = vsyncadd [#allocation5], %s25
      %s27 = sshll.u32 [#allocation4], 4
      %s28 = int_to_ptr.vmem [resolvable:$true] %s27
      %33 = dma.hbm_to_vmem [thread:$0]  %s1, 256, %s28, [#allocation5], 128, 128, 8
    $region9: #{tpu_custom_call.1} parent=1 // pred_fallthru
      _
    // Predicated region
    $region10: #{tpu_custom_call.1} parent=1 // pred_check
      _
    $region11: #{tpu_custom_call.1} parent=1 // pred_check_branch
      %35 = sbr.rel (0) target = $region13
    $region12: #{tpu_custom_call.1} parent=1 // pred_region
      %36 = dma.done [#allocation3], 64
    $region13: #{tpu_custom_call.1} parent=1 // pred_fallthru
      _
    // Predicated region
    $region14: #{tpu_custom_call.1} parent=1 // pred_check
      _
    $region15: #{tpu_custom_call.1} parent=1 // pred_check_branch
      %38 = sbr.rel (0) target = $region17
    $region16: #{tpu_custom_call.1} parent=1 // pred_region
      %39 = dma.done [#allocation5], 256
    $region17: #{tpu_custom_call.1} parent=1 // pred_fallthru
      _
    %s40 = sadd.s32 0, 0
    %p41 = scmp.eq.s32.totalorder 0, 0
    // Predicated region
    $region18: #{tpu_custom_call.1} parent=1 // pred_check
      %p42 = pneg %p41
    $region19: #{tpu_custom_call.1} parent=1 // pred_check_branch
      %44 = sbr.rel (%p42) target = $region21
    $region20: #{tpu_custom_call.1} parent=1 // pred_region
      %vm45 = vcmask 15360
      %46 = vst.msk [vmem:[%s2] sm:$0xff] %vm45, 0.0
      %47 = vst.msk [vmem:[%s2 + $0x8] sm:$0xff] %vm45, 0.0
    $region21: #{tpu_custom_call.1} parent=1 // pred_fallthru
      _
    %v48 = vld [vmem:[#allocation2] sm:$0xf]
    %v49 = vld [vmem:[#allocation4] sm:$0xff]
    %v50 = vld [vmem:[#allocation4 + $0x8] sm:$0xff]
    %v51 = vlaneseq
    %v52 = vand.u32 %v51, 127
    %vm53 = vcmp.lt.s32.totalorder %v52, 0
    %v54 = vsub.s32 0, %v52
    %v55 = vsel %vm53, %v54, %v52
    %v56 = vshrl.u32 %v55, 4
    %v57 = vand.u32 %v55, 15
    %v58 = vsub.s32 0, %v57
    %v59 = vsel %vm53, %v58, %v57
    %vm60 = vcmp.ne.s32.totalorder %v59, 0
    %vm61 = vcmp.lt.s32.totalorder %v59, 0
    %vm62 = vmand %vm61, %vm60
    %v63 = vadd.s32 %v59, 16
    %v64 = vsel %vm62, %v63, %v59
    %66 = vrot.lane.b32.xlu0 %v48, 2
    %v67 = vpop.permute.xlu0 %66
    %vm69 = vcmask 15360
    %v70 = vsel %vm69, 0.0, %v67
    %v71 = vadd.s32 %v64, 4294967294
    %vm72 = vcmp.ge.s32.totalorder %v71, 0
    %vm73 = vcmp.lt.s32.totalorder %v71, 16
    %vm74 = vmand %vm72, %vm73
    %v75 = vsel %vm74, 1, 0
    %vm76 = vcmp.eq.s32.totalorder %v75, 1
    %v77 = vsel %vm76, %v70, 0.0
    %78 = vrot.lane.b32.xlu0 %v48, 1
    %v79 = vpop.permute.xlu0 %78
    %vm81 = vcmask 7168
    %v82 = vsel %vm81, 0.0, %v79
    %v83 = vadd.s32 %v64, 4294967295
    %vm84 = vcmp.ge.s32.totalorder %v83, 0
    %vm85 = vcmp.lt.s32.totalorder %v83, 16
    %vm86 = vmand %vm84, %vm85
    %v87 = vsel %vm86, 1, 0
    %vm88 = vcmp.eq.s32.totalorder %v87, 1
    %v89 = vsel %vm88, %v82, 0.0
    %90 = vrot.lane.b32.xlu0 %v48, 127
    %v91 = vpop.permute.xlu0 %90
    %vm93 = vcmask 1039360
    %v94 = vsel %vm93, %v91, 0.0
    %v95 = vadd.s32 %v64, 1
    %vm96 = vcmp.ge.s32.totalorder %v95, 0
    %vm97 = vcmp.lt.s32.totalorder %v95, 16
    %vm98 = vmand %vm96, %vm97
    %v99 = vsel %vm98, 1, 0
    %vm100 = vcmp.eq.s32.totalorder %v99, 1
    %v101 = vsel %vm100, %v94, 0.0
    %102 = vrot.lane.b32.xlu0 %v48, 126
    %v103 = vpop.permute.xlu0 %102
    %vm105 = vcmask 1031168
    %v106 = vsel %vm105, %v103, 0.0
    %v107 = vadd.s32 %v64, 2
    %vm108 = vcmp.ge.s32.totalorder %v107, 0
    %vm109 = vcmp.lt.s32.totalorder %v107, 16
    %vm110 = vmand %vm108, %vm109
    %v111 = vsel %vm110, 1, 0
    %vm112 = vcmp.eq.s32.totalorder %v111, 1
    %v113 = vsel %vm112, %v106, 0.0
    %v115 = vrot.slane %v89, 4
    %v118 = vrot.slane %v101, 4
    %vm120 = vcmask 1043456
    %v121 = vsel %vm120, %v77, %v115
    %v122 = vsel %vm120, %v48, %v118
    %vm123 = vcmask 162816
    %v125 = vsel %vm123, %v49, 0
    %v128 = vsel %vm123, %v50, 0
    %v131 = vsel %vm120, %v113, 0
    %133 = vmatprep.subr.mxu0 0.0
    %134 = vmatpush1.msra.mxu0 %v121
    %135 = vmatprep.subr.mxu0 0.0
    %136 = vmatpush1.msra.mxu0 %v122
    %137 = vmatprep.subr.mxu0 0.0
    %138 = vmatpush1.msra.mxu0 %v131
    %139 = vmatprep.subr.mxu0 0.0
    %140 = vmatpush1.msra.mxu0 0.0
    %141 = vmatprep.subr.mxu0 0.0
    %142 = vmatpush1.msra.mxu0 0.0
    %143 = vmatprep.subr.mxu0 0.0
    %144 = vmatpush1.msra.mxu0 0.0
    %145 = vmatprep.subr.mxu0 0.0
    %146 = vmatpush1.msra.mxu0 0.0
    %147 = vmatprep.subr.mxu0 0.0
    %148 = vmatpush1.msra.mxu0 0.0
    %149 = vmatprep.subr.mxu0 0.0
    %150 = vmatpush1.msra.mxu0 0.0
    %151 = vmatprep.subr.mxu0 0.0
    %152 = vmatpush1.msra.mxu0 0.0
    %153 = vmatprep.subr.mxu0 0.0
    %154 = vmatpush1.msra.mxu0 0.0
    %155 = vmatprep.subr.mxu0 0.0
    %156 = vmatpush1.msra.mxu0 0.0
    %157 = vmatprep.subr.mxu0 0.0
    %158 = vmatpush1.msra.mxu0 0.0
    %159 = vmatprep.subr.mxu0 0.0
    %160 = vmatpush1.msra.mxu0 0.0
    %161 = vmatprep.subr.mxu0 0.0
    %162 = vmatpush1.msra.mxu0 0.0
    %163 = vmatprep.subr.mxu0 0.0
    %164 = vmatpush1.msra.mxu0 0.0
    %165 = vmatprep.subr.mxu0 0.0
    %166 = vmatpush1.msra.mxu0 0.0
    %167 = vmatprep.subr.mxu0 0.0
    %168 = vmatpush1.msra.mxu0 0.0
    %169 = vmatprep.subr.mxu0 0.0
    %170 = vmatpush1.msra.mxu0 0.0
    %171 = vmatprep.subr.mxu0 0.0
    %172 = vmatpush1.msra.mxu0 0.0
    %173 = vmatprep.subr.mxu0 0.0
    %174 = vmatpush1.msra.mxu0 0.0
    %175 = vmatprep.subr.mxu0 0.0
    %176 = vmatpush1.msra.mxu0 0.0
    %177 = vmatprep.subr.mxu0 0.0
    %178 = vmatpush1.msra.mxu0 0.0
    %179 = vmatprep.subr.mxu0 0.0
    %180 = vmatpush1.msra.mxu0 0.0
    %181 = vmatprep.subr.mxu0 0.0
    %182 = vmatpush1.msra.mxu0 0.0
    %183 = vmatprep.subr.mxu0 0.0
    %184 = vmatpush1.msra.mxu0 0.0
    %185 = vmatprep.subr.mxu0 0.0
    %186 = vmatpush1.msra.mxu0 0.0
    %187 = vmatprep.subr.mxu0 0.0
    %188 = vmatpush1.msra.mxu0 0.0
    %189 = vmatprep.subr.mxu0 0.0
    %190 = vmatpush1.msra.mxu0 0.0
    %191 = vmatprep.subr.mxu0 0.0
    %192 = vmatpush1.msra.mxu0 0.0
    %193 = vmatprep.subr.mxu0 0.0
    %194 = vmatpush1.msra.mxu0 0.0
    %195 = vmatprep.subr.mxu0 0.0
    %196 = vmatpush1.msra.mxu0 0.0
    %197 = vmatprep.mubr.f32.mxu0 0.0
    %198 = vmatmul.mubr.f32.gmra.mrb[0].mxu0 %v125
    %v199 = vpop.f32.mrb[0].mxu0
    %v200 = vadd.f32 0.0, %v199
    %v201 = vpop.f32.mrb[0].mxu0
    %202 = vmatprep.mubr.f32.mxu0 0.0
    %203 = vmatmul.mubr.f32.gmra.mrb[0].mxu0 %v128
    %v204 = vpop.f32.mrb[0].mxu0
    %v205 = vadd.f32 0.0, %v204
    %v206 = vpop.f32.mrb[0].mxu0
    %207 = vdwg.mxu0
    %v208 = vld [vmem:[%s2] sm:$0xff]
    %v209 = vld [vmem:[%s2 + $0x8] sm:$0xff]
    %210 = vadd.xlane.f32.xlu0 %v200
    %v211 = vpop.xlane.xlu0 %210
    %212 = vadd.xlane.f32.xlu0 %v205
    %v213 = vpop.xlane.xlu0 %212
    %v214 = vmul.f32 %v200, %v200
    %v215 = vmul.f32 %v205, %v205
    %216 = vadd.xlane.f32.xlu0 %v214
    %v217 = vpop.xlane.xlu0 %216
    %218 = vadd.xlane.f32.xlu0 %v215
    %v219 = vpop.xlane.xlu0 %218
    %v220 = vsel %vm81, %v211, %v217
    %v221 = vsel %vm81, %v213, %v219
    %v222 = vadd.f32 %v208, %v220
    %v223 = vadd.f32 %v209, %v221
    %224 = vst.msk [vmem:[%s2] sm:$0xff] %vm69, %v222
    %225 = vst.msk [vmem:[%s2 + $0x8] sm:$0xff] %vm69, %v223
    // Predicated region
    $region22: #{tpu_custom_call.1} parent=1 // pred_check
      _
    $region23: #{tpu_custom_call.1} parent=1 // pred_check_branch
      %227 = sbr.rel (0) target = $region25
    $region24: #{tpu_custom_call.1} parent=1 // pred_region
      _
    $region25: #{tpu_custom_call.1} parent=1 // pred_fallthru
      _
    // Predicated region
    $region26: #{tpu_custom_call.1} parent=1 // pred_check
      _
    $region27: #{tpu_custom_call.1} parent=1 // pred_check_branch
      %229 = sbr.rel (0) target = $region29
    $region28: #{tpu_custom_call.1} parent=1 // pred_region
      _
    $region29: #{tpu_custom_call.1} parent=1 // pred_fallthru
      _
    %230 = vsyncpa [#allocation3], 1
    %231 = vsyncpa [#allocation5], 1

</llo_original>
